<compile_context>
chip_gen: v7x
topology: tpu7x:2x2x1
jax: 0.10.0
libtpu: 0.0.40
codegen_flags: <defaults>
</compile_context>

<pallas_src>
import jax
import jax.numpy as jnp
from jax.experimental import pallas as pl
from jax.experimental.pallas import tpu as pltpu

# Scaled-down shapes consistent with the module
# (96 -> 16, 2304 -> 256, 384 -> 128, spatial 7x7 as in the real module, N = 1).
N = 1
C_IN = 16
C_MID = 256
C_OUT = 128
H = 7
W = 7

_LANE = 128


def _round_up(x, m):
    return (x + m - 1) // m * m


def se_conv_kernel(se_ref, w1_ref, b1_ref, x_ref, w2_ref, o_ref):
    # --- SE gate, channel-major, fp32 ---------------------------------------
    # (C_MID, C_IN) * (1, C_IN) --sum over lanes--> (C_MID, 1)
    gate_pre = jnp.sum(w1_ref[...] * se_ref[...], axis=-1, keepdims=True) \
        + b1_ref[...]
    gate = jax.nn.sigmoid(gate_pre)                       # (C_MID, 1), EUP/VPU fp32

    # --- broadcast scale over the (padded) spatial lane axis, fp32 ----------
    scaled = x_ref[...] * gate                            # (C_MID, HW_pad)

    # --- big 1x1 conv as channel contraction on the MXU ---------------------
    # bf16 operands, fp32 accumulation; output lane dim is dense (HW_pad=128k).
    o_ref[...] = jnp.dot(w2_ref[...], scaled.astype(jnp.bfloat16),
                         preferred_element_type=jnp.float32)


def se_conv_pallas(se_row, w1_mat, b1_col, x_cm, w2_bf16):
    c_out = w2_bf16.shape[0]
    hw_pad = x_cm.shape[1]
    return pl.pallas_call(
        se_conv_kernel,
        out_shape=jax.ShapeDtypeStruct((c_out, hw_pad), jnp.float32),
        in_specs=[
            pl.BlockSpec(memory_space=pltpu.MemorySpace.VMEM),  # se  (1, C_IN)
            pl.BlockSpec(memory_space=pltpu.MemorySpace.VMEM),  # w1  (C_MID, C_IN)
            pl.BlockSpec(memory_space=pltpu.MemorySpace.VMEM),  # b1  (C_MID, 1)
            pl.BlockSpec(memory_space=pltpu.MemorySpace.VMEM),  # x   (C_MID, HW_pad)
            pl.BlockSpec(memory_space=pltpu.MemorySpace.VMEM),  # w2  (C_OUT, C_MID) bf16
        ],
        out_specs=pl.BlockSpec(memory_space=pltpu.MemorySpace.VMEM),
    )(se_row, w1_mat, b1_col, x_cm, w2_bf16)


def module_forward(x792, x789, w1, b1, w2):
    """Mirror of M.forward using the Pallas kernel.

    x792: (1, C_IN, 1, 1)       float32
    x789: (1, C_MID, H, W)      float32
    w1:   (C_MID, C_IN, 1, 1)   conv2d246 weight
    b1:   (C_MID,)              conv2d246 bias
    w2:   (C_OUT, C_MID, 1, 1)  conv2d247 weight (no bias)
    returns: (1, C_OUT, H, W)   float32
    """
    n, c_in = x792.shape[0], x792.shape[1]
    _, c_mid, h, w = x789.shape
    c_out = w2.shape[0]
    assert n == 1 and x789.shape[0] == 1  # module is exercised with N=1
    hw = h * w
    hw_pad = _round_up(hw, _LANE)

    # Reshape-only layout prep (no transposes).
    se_row = x792.reshape(1, c_in)
    w1_mat = w1.reshape(c_mid, c_in)
    b1_col = b1.reshape(c_mid, 1)
    x_cm = x789.reshape(c_mid, hw)                        # channel-major, free reshape
    if hw_pad != hw:
        x_cm = jnp.pad(x_cm, ((0, 0), (0, hw_pad - hw)))  # lane-dense spatial axis
    w2_bf16 = w2.reshape(c_out, c_mid).astype(jnp.bfloat16)  # halve dominant HBM load

    out_cm = se_conv_pallas(se_row, w1_mat, b1_col, x_cm, w2_bf16)  # (C_OUT, HW_pad)
    # Channel-major output is already NCHW after dropping the pad columns.
    return out_cm[:, :hw].reshape(1, c_out, h, w)


def reference_forward(x792, x789, w1, b1, w2):
    """Pure-JAX fp32 reference mirroring the PyTorch module."""
    _, c_mid, h, w = x789.shape
    c_in = x792.shape[1]
    c_out = w2.shape[0]
    se_vec = x792.reshape(1, c_in)
    gate = jax.nn.sigmoid(se_vec @ w1.reshape(c_mid, c_in).T + b1[None, :])  # (1, C_MID)
    x_2d = jnp.transpose(x789[0], (1, 2, 0)).reshape(h * w, c_mid)
    out_2d = (x_2d * gate) @ w2.reshape(c_out, c_mid).T
    return jnp.transpose(out_2d.reshape(h, w, c_out), (2, 0, 1))[None]


if __name__ == "__main__":
    key = jax.random.PRNGKey(0)
    k1, k2, k3, k4, k5 = jax.random.split(key, 5)

    # Inputs (analogues of x792 and x789)
    x792 = jax.random.normal(k1, (N, C_IN, 1, 1), dtype=jnp.float32)
    x789 = jax.random.normal(k2, (N, C_MID, H, W), dtype=jnp.float32)

    # Deterministic synthetic parameters in PyTorch conv-weight layout.
    w1 = jax.random.normal(k3, (C_MID, C_IN, 1, 1), dtype=jnp.float32) * 0.1
    b1 = jax.random.normal(k4, (C_MID,), dtype=jnp.float32) * 0.1
    w2 = jax.random.normal(k5, (C_OUT, C_MID, 1, 1), dtype=jnp.float32) * 0.05

    fwd = jax.jit(module_forward)
    out = jax.block_until_ready(fwd(x792, x789, w1, b1, w2))

    ref = reference_forward(x792, x789, w1, b1, w2)
    assert out.shape == (N, C_OUT, H, W), out.shape
    # bf16 MXU operands with fp32 accumulation => loosened tolerance.
    assert jnp.allclose(out, ref, atol=2e-2, rtol=2e-2), "mismatch vs reference"

    print("KERNEL_OK")
</pallas_src>

<mosaic_0001>
module attributes {stable_mosaic.version = 11 : i64} {
  func.func @se_conv_kernel(%arg0: memref<1x16xf32, #tpu.memory_space<vmem>>, %arg1: memref<256x16xf32, #tpu.memory_space<vmem>>, %arg2: memref<256x1xf32, #tpu.memory_space<vmem>>, %arg3: memref<256x128xf32, #tpu.memory_space<vmem>>, %arg4: memref<128x256xbf16, #tpu.memory_space<vmem>>, %arg5: memref<128x128xf32, #tpu.memory_space<vmem>>) attributes {dimension_semantics = [], scalar_prefetch = 0 : i64, scratch_operands = 0 : i64, tpu.core_type = #tpu.core_type<tc>} {
    %c0 = arith.constant 0 : index
    %c0_0 = arith.constant 0 : index
    %0 = vector.load %arg1[%c0, %c0_0] : memref<256x16xf32, #tpu.memory_space<vmem>>, vector<256x16xf32>
    %c0_1 = arith.constant 0 : index
    %c0_2 = arith.constant 0 : index
    %1 = vector.load %arg0[%c0_1, %c0_2] : memref<1x16xf32, #tpu.memory_space<vmem>>, vector<1x16xf32>
    %2 = vector.broadcast %1 : vector<1x16xf32> to vector<256x16xf32>
    %3 = arith.mulf %0, %2 : vector<256x16xf32>
    %cst = arith.constant dense<0.000000e+00> : vector<256xf32>
    %4 = vector.multi_reduction <add>, %3, %cst [1] : vector<256x16xf32> to vector<256xf32>
    %5 = vector.shape_cast %4 : vector<256xf32> to vector<256x1xf32>
    %c0_3 = arith.constant 0 : index
    %c0_4 = arith.constant 0 : index
    %6 = vector.load %arg2[%c0_3, %c0_4] : memref<256x1xf32, #tpu.memory_space<vmem>>, vector<256x1xf32>
    %7 = arith.addf %5, %6 : vector<256x1xf32>
    %8 = arith.negf %7 : vector<256x1xf32>
    %9 = math.exp %8 : vector<256x1xf32>
    %cst_5 = arith.constant 1.000000e+00 : f32
    %10 = vector.broadcast %cst_5 : f32 to vector<256x1xf32>
    %11 = arith.addf %10, %9 : vector<256x1xf32>
    %12 = arith.divf %10, %11 : vector<256x1xf32>
    %c0_6 = arith.constant 0 : index
    %c0_7 = arith.constant 0 : index
    %13 = vector.load %arg3[%c0_6, %c0_7] : memref<256x128xf32, #tpu.memory_space<vmem>>, vector<256x128xf32>
    %14 = vector.broadcast %12 : vector<256x1xf32> to vector<256x128xf32>
    %15 = arith.mulf %13, %14 : vector<256x128xf32>
    %c0_8 = arith.constant 0 : index
    %c0_9 = arith.constant 0 : index
    %16 = vector.load %arg4[%c0_8, %c0_9] : memref<128x256xbf16, #tpu.memory_space<vmem>>, vector<128x256xbf16>
    %17 = arith.truncf %15 : vector<256x128xf32> to vector<256x128xbf16>
    %cst_10 = arith.constant dense<0.000000e+00> : vector<128x128xf32>
    %18 = tpu.matmul %16, %17, %cst_10 {dimension_numbers = #tpu.dot_dimension_numbers<[1], [0], [0], [1], [0, 0, 1, 1], [], []>} : vector<128x256xbf16>, vector<256x128xbf16>, vector<128x128xf32> -> vector<128x128xf32>
    %c0_11 = arith.constant 0 : index
    %c0_12 = arith.constant 0 : index
    %19 = vector.load %arg5[%c0_11, %c0_12] : memref<128x128xf32, #tpu.memory_space<vmem>>, vector<128x128xf32>
    tpu.vector_store %arg5[%c0_11, %c0_12], %18 {strides = array<i32>} : memref<128x128xf32, #tpu.memory_space<vmem>>, vector<128x128xf32>,
    return
  }
}

</mosaic_0001>

<llo_original>
// kernel: module_forward.1
$region0: #{module_forward.1}
  #allocation0 [shape = 'u32[]', space=smem, size = 0x4, offset = 0x4, fixed_abs, tag = 'smem constant byte address 0x4 - core index']
  #allocation1 [shape = 'u32[144,128]{1,0:T(1,128)}', space=vmem, size = 0x12000, scoped, tag = 'internal scratch']
  %s0 = inlined_call_operand.vmem [shape: f32[1,16], index: 0, kind: input, shape index: {}]
  %s1 = inlined_call_operand.vmem [shape: f32[256,16], index: 1, kind: input, shape index: {}]
  %s2 = inlined_call_operand.vmem [shape: f32[256,1], index: 2, kind: input, shape index: {}]
  %s3 = inlined_call_operand.vmem [shape: f32[256,128], index: 3, kind: input, shape index: {}]
  %s4 = inlined_call_operand.vmem [shape: bf16[128,256], index: 4, kind: input, shape index: {}]
  %s5 = inlined_call_operand.vmem [shape: f32[128,128], index: 5, kind: output, shape index: {}]
  %s6 = sld [smem:[#allocation0]]
  $region30: #{module_forward.1} parent=0
    _
  %s8 = ssub.s32 1, %s6
  %s9 = scalar_select 0, %s8, %s6
  // Predicated region
  $region2: #{module_forward.1} parent=0 // pred_check
    _
  $region3: #{module_forward.1} parent=0 // pred_check_branch
    %11 = sbr.rel (0) target = $region5
  $region4: #{module_forward.1} parent=0 // pred_region
    _
  $region5: #{module_forward.1} parent=0 // pred_fallthru
    _
  // Predicated region
  $region6: #{module_forward.1} parent=0 // pred_check
    _
  $region7: #{module_forward.1} parent=0 // pred_check_branch
    %13 = sbr.rel (0) target = $region9
  $region8: #{module_forward.1} parent=0 // pred_region
    _
  $region9: #{module_forward.1} parent=0 // pred_fallthru
    _
  // Predicated region
  $region10: #{module_forward.1} parent=0 // pred_check
    _
  $region11: #{module_forward.1} parent=0 // pred_check_branch
    %15 = sbr.rel (0) target = $region13
  $region12: #{module_forward.1} parent=0 // pred_region
    _
  $region13: #{module_forward.1} parent=0 // pred_fallthru
    _
  // Predicated region
  $region14: #{module_forward.1} parent=0 // pred_check
    _
  $region15: #{module_forward.1} parent=0 // pred_check_branch
    %17 = sbr.rel (0) target = $region17
  $region16: #{module_forward.1} parent=0 // pred_region
    _
  $region17: #{module_forward.1} parent=0 // pred_fallthru
    _
  // Predicated region
  $region18: #{module_forward.1} parent=0 // pred_check
    _
  $region19: #{module_forward.1} parent=0 // pred_check_branch
    %19 = sbr.rel (0) target = $region21
  $region20: #{module_forward.1} parent=0 // pred_region
    _
  $region21: #{module_forward.1} parent=0 // pred_fallthru
    _
  %v21 = vld [vmem:[%s1] sm:$0xff]
  %v22 = vld [vmem:[%s1 + $0x8] sm:$0xff]
  %v23 = vld [vmem:[%s1 + $0x10] sm:$0xff]
  %v24 = vld [vmem:[%s1 + $0x18] sm:$0xff]
  %v25 = vld [vmem:[%s1 + $0x20] sm:$0xff]
  %v26 = vld [vmem:[%s1 + $0x28] sm:$0xff]
  %v27 = vld [vmem:[%s1 + $0x30] sm:$0xff]
  %v28 = vld [vmem:[%s1 + $0x38] sm:$0xff]
  %v29 = vld [vmem:[%s1 + $0x40] sm:$0xff]
  %v30 = vld [vmem:[%s1 + $0x48] sm:$0xff]
  %v31 = vld [vmem:[%s1 + $0x50] sm:$0xff]
  %v32 = vld [vmem:[%s1 + $0x58] sm:$0xff]
  %v33 = vld [vmem:[%s1 + $0x60] sm:$0xff]
  %v34 = vld [vmem:[%s1 + $0x68] sm:$0xff]
  %v35 = vld [vmem:[%s1 + $0x70] sm:$0xff]
  %v36 = vld [vmem:[%s1 + $0x78] sm:$0xff]
  %v37 = vld [vmem:[%s1 + $0x80] sm:$0xff]
  %v38 = vld [vmem:[%s1 + $0x88] sm:$0xff]
  %v39 = vld [vmem:[%s1 + $0x90] sm:$0xff]
  %v40 = vld [vmem:[%s1 + $0x98] sm:$0xff]
  %v41 = vld [vmem:[%s1 + $0xa0] sm:$0xff]
  %v42 = vld [vmem:[%s1 + $0xa8] sm:$0xff]
  %v43 = vld [vmem:[%s1 + $0xb0] sm:$0xff]
  %v44 = vld [vmem:[%s1 + $0xb8] sm:$0xff]
  %v45 = vld [vmem:[%s1 + $0xc0] sm:$0xff]
  %v46 = vld [vmem:[%s1 + $0xc8] sm:$0xff]
  %v47 = vld [vmem:[%s1 + $0xd0] sm:$0xff]
  %v48 = vld [vmem:[%s1 + $0xd8] sm:$0xff]
  %v49 = vld [vmem:[%s1 + $0xe0] sm:$0xff]
  %v50 = vld [vmem:[%s1 + $0xe8] sm:$0xff]
  %v51 = vld [vmem:[%s1 + $0xf0] sm:$0xff]
  %v52 = vld [vmem:[%s1 + $0xf8] sm:$0xff]
  %v53 = vld [vmem:[%s0] sm:$0x1]
  %v55 = vlaneseq
  %v56 = vshrl.u32 %v55, 7
  %v57 = vsub.s32 0, %v56
  %v58 = vrot.slane %v53, %v57
  %v60 = vmul.f32 %v21, %v58
  %v61 = vmul.f32 %v22, %v58
  %v62 = vmul.f32 %v23, %v58
  %v63 = vmul.f32 %v24, %v58
  %v64 = vmul.f32 %v25, %v58
  %v65 = vmul.f32 %v26, %v58
  %v66 = vmul.f32 %v27, %v58
  %v67 = vmul.f32 %v28, %v58
  %v68 = vmul.f32 %v29, %v58
  %v69 = vmul.f32 %v30, %v58
  %v70 = vmul.f32 %v31, %v58
  %v71 = vmul.f32 %v32, %v58
  %v72 = vmul.f32 %v33, %v58
  %v73 = vmul.f32 %v34, %v58
  %v74 = vmul.f32 %v35, %v58
  %v75 = vmul.f32 %v36, %v58
  %v76 = vmul.f32 %v37, %v58
  %v77 = vmul.f32 %v38, %v58
  %v78 = vmul.f32 %v39, %v58
  %v79 = vmul.f32 %v40, %v58
  %v80 = vmul.f32 %v41, %v58
  %v81 = vmul.f32 %v42, %v58
  %v82 = vmul.f32 %v43, %v58
  %v83 = vmul.f32 %v44, %v58
  %v84 = vmul.f32 %v45, %v58
  %v85 = vmul.f32 %v46, %v58
  %v86 = vmul.f32 %v47, %v58
  %v87 = vmul.f32 %v48, %v58
  %v88 = vmul.f32 %v49, %v58
  %v89 = vmul.f32 %v50, %v58
  %v90 = vmul.f32 %v51, %v58
  %v91 = vmul.f32 %v52, %v58
  %vm92 = vcmask 130048
  %v93 = vsel %vm92, %v60, 0.0
  %94 = vadd.xlane.f32.xlu0 %v93
  %v95 = vpop.xlane.xlu0 %94
  %v96 = vsel %vm92, %v61, 0.0
  %97 = vadd.xlane.f32.xlu0 %v96
  %v98 = vpop.xlane.xlu0 %97
  %v99 = vsel %vm92, %v62, 0.0
  %100 = vadd.xlane.f32.xlu0 %v99
  %v101 = vpop.xlane.xlu0 %100
  %v102 = vsel %vm92, %v63, 0.0
  %103 = vadd.xlane.f32.xlu0 %v102
  %v104 = vpop.xlane.xlu0 %103
  %v105 = vsel %vm92, %v64, 0.0
  %106 = vadd.xlane.f32.xlu0 %v105
  %v107 = vpop.xlane.xlu0 %106
  %v108 = vsel %vm92, %v65, 0.0
  %109 = vadd.xlane.f32.xlu0 %v108
  %v110 = vpop.xlane.xlu0 %109
  %v111 = vsel %vm92, %v66, 0.0
  %112 = vadd.xlane.f32.xlu0 %v111
  %v113 = vpop.xlane.xlu0 %112
  %v114 = vsel %vm92, %v67, 0.0
  %115 = vadd.xlane.f32.xlu0 %v114
  %v116 = vpop.xlane.xlu0 %115
  %v117 = vsel %vm92, %v68, 0.0
  %118 = vadd.xlane.f32.xlu0 %v117
  %v119 = vpop.xlane.xlu0 %118
  %v120 = vsel %vm92, %v69, 0.0
  %121 = vadd.xlane.f32.xlu0 %v120
  %v122 = vpop.xlane.xlu0 %121
  %v123 = vsel %vm92, %v70, 0.0
  %124 = vadd.xlane.f32.xlu0 %v123
  %v125 = vpop.xlane.xlu0 %124
  %v126 = vsel %vm92, %v71, 0.0
  %127 = vadd.xlane.f32.xlu0 %v126
  %v128 = vpop.xlane.xlu0 %127
  %v129 = vsel %vm92, %v72, 0.0
  %130 = vadd.xlane.f32.xlu0 %v129
  %v131 = vpop.xlane.xlu0 %130
  %v132 = vsel %vm92, %v73, 0.0
  %133 = vadd.xlane.f32.xlu0 %v132
  %v134 = vpop.xlane.xlu0 %133
  %v135 = vsel %vm92, %v74, 0.0
  %136 = vadd.xlane.f32.xlu0 %v135
  %v137 = vpop.xlane.xlu0 %136
  %v138 = vsel %vm92, %v75, 0.0
  %139 = vadd.xlane.f32.xlu0 %v138
  %v140 = vpop.xlane.xlu0 %139
  %v141 = vsel %vm92, %v76, 0.0
  %142 = vadd.xlane.f32.xlu0 %v141
  %v143 = vpop.xlane.xlu0 %142
  %v144 = vsel %vm92, %v77, 0.0
  %145 = vadd.xlane.f32.xlu0 %v144
  %v146 = vpop.xlane.xlu0 %145
  %v147 = vsel %vm92, %v78, 0.0
  %148 = vadd.xlane.f32.xlu0 %v147
  %v149 = vpop.xlane.xlu0 %148
  %v150 = vsel %vm92, %v79, 0.0
  %151 = vadd.xlane.f32.xlu0 %v150
  %v152 = vpop.xlane.xlu0 %151
  %v153 = vsel %vm92, %v80, 0.0
  %154 = vadd.xlane.f32.xlu0 %v153
  %v155 = vpop.xlane.xlu0 %154
  %v156 = vsel %vm92, %v81, 0.0
  %157 = vadd.xlane.f32.xlu0 %v156
  %v158 = vpop.xlane.xlu0 %157
  %v159 = vsel %vm92, %v82, 0.0
  %160 = vadd.xlane.f32.xlu0 %v159
  %v161 = vpop.xlane.xlu0 %160
  %v162 = vsel %vm92, %v83, 0.0
  %163 = vadd.xlane.f32.xlu0 %v162
  %v164 = vpop.xlane.xlu0 %163
  %v165 = vsel %vm92, %v84, 0.0
  %166 = vadd.xlane.f32.xlu0 %v165
  %v167 = vpop.xlane.xlu0 %166
  %v168 = vsel %vm92, %v85, 0.0
  %169 = vadd.xlane.f32.xlu0 %v168
  %v170 = vpop.xlane.xlu0 %169
  %v171 = vsel %vm92, %v86, 0.0
  %172 = vadd.xlane.f32.xlu0 %v171
  %v173 = vpop.xlane.xlu0 %172
  %v174 = vsel %vm92, %v87, 0.0
  %175 = vadd.xlane.f32.xlu0 %v174
  %v176 = vpop.xlane.xlu0 %175
  %v177 = vsel %vm92, %v88, 0.0
  %178 = vadd.xlane.f32.xlu0 %v177
  %v179 = vpop.xlane.xlu0 %178
  %v180 = vsel %vm92, %v89, 0.0
  %181 = vadd.xlane.f32.xlu0 %v180
  %v182 = vpop.xlane.xlu0 %181
  %v183 = vsel %vm92, %v90, 0.0
  %184 = vadd.xlane.f32.xlu0 %v183
  %v185 = vpop.xlane.xlu0 %184
  %v186 = vsel %vm92, %v91, 0.0
  %187 = vadd.xlane.f32.xlu0 %v186
  %v188 = vpop.xlane.xlu0 %187
  %v189 = vld [vmem:[%s2] sm:$0xff]
  %v190 = vld [vmem:[%s2 + $0x8] sm:$0xff]
  %v191 = vld [vmem:[%s2 + $0x10] sm:$0xff]
  %v192 = vld [vmem:[%s2 + $0x18] sm:$0xff]
  %v193 = vld [vmem:[%s2 + $0x20] sm:$0xff]
  %v194 = vld [vmem:[%s2 + $0x28] sm:$0xff]
  %v195 = vld [vmem:[%s2 + $0x30] sm:$0xff]
  %v196 = vld [vmem:[%s2 + $0x38] sm:$0xff]
  %v197 = vld [vmem:[%s2 + $0x40] sm:$0xff]
  %v198 = vld [vmem:[%s2 + $0x48] sm:$0xff]
  %v199 = vld [vmem:[%s2 + $0x50] sm:$0xff]
  %v200 = vld [vmem:[%s2 + $0x58] sm:$0xff]
  %v201 = vld [vmem:[%s2 + $0x60] sm:$0xff]
  %v202 = vld [vmem:[%s2 + $0x68] sm:$0xff]
  %v203 = vld [vmem:[%s2 + $0x70] sm:$0xff]
  %v204 = vld [vmem:[%s2 + $0x78] sm:$0xff]
  %v205 = vld [vmem:[%s2 + $0x80] sm:$0xff]
  %v206 = vld [vmem:[%s2 + $0x88] sm:$0xff]
  %v207 = vld [vmem:[%s2 + $0x90] sm:$0xff]
  %v208 = vld [vmem:[%s2 + $0x98] sm:$0xff]
  %v209 = vld [vmem:[%s2 + $0xa0] sm:$0xff]
  %v210 = vld [vmem:[%s2 + $0xa8] sm:$0xff]
  %v211 = vld [vmem:[%s2 + $0xb0] sm:$0xff]
  %v212 = vld [vmem:[%s2 + $0xb8] sm:$0xff]
  %v213 = vld [vmem:[%s2 + $0xc0] sm:$0xff]
  %v214 = vld [vmem:[%s2 + $0xc8] sm:$0xff]
  %v215 = vld [vmem:[%s2 + $0xd0] sm:$0xff]
  %v216 = vld [vmem:[%s2 + $0xd8] sm:$0xff]
  %v217 = vld [vmem:[%s2 + $0xe0] sm:$0xff]
  %v218 = vld [vmem:[%s2 + $0xe8] sm:$0xff]
  %v219 = vld [vmem:[%s2 + $0xf0] sm:$0xff]
  %v220 = vld [vmem:[%s2 + $0xf8] sm:$0xff]
  %v221 = vadd.f32 %v95, %v189
  %v222 = vadd.f32 %v98, %v190
  %v223 = vadd.f32 %v101, %v191
  %v224 = vadd.f32 %v104, %v192
  %v225 = vadd.f32 %v107, %v193
  %v226 = vadd.f32 %v110, %v194
  %v227 = vadd.f32 %v113, %v195
  %v228 = vadd.f32 %v116, %v196
  %v229 = vadd.f32 %v119, %v197
  %v230 = vadd.f32 %v122, %v198
  %v231 = vadd.f32 %v125, %v199
  %v232 = vadd.f32 %v128, %v200
  %v233 = vadd.f32 %v131, %v201
  %v234 = vadd.f32 %v134, %v202
  %v235 = vadd.f32 %v137, %v203
  %v236 = vadd.f32 %v140, %v204
  %v237 = vadd.f32 %v143, %v205
  %v238 = vadd.f32 %v146, %v206
  %v239 = vadd.f32 %v149, %v207
  %v240 = vadd.f32 %v152, %v208
  %v241 = vadd.f32 %v155, %v209
  %v242 = vadd.f32 %v158, %v210
  %v243 = vadd.f32 %v161, %v211
  %v244 = vadd.f32 %v164, %v212
  %v245 = vadd.f32 %v167, %v213
  %v246 = vadd.f32 %v170, %v214
  %v247 = vadd.f32 %v173, %v215
  %v248 = vadd.f32 %v176, %v216
  %v249 = vadd.f32 %v179, %v217
  %v250 = vadd.f32 %v182, %v218
  %v251 = vadd.f32 %v185, %v219
  %v252 = vadd.f32 %v188, %v220
  %v253 = vxor.u32 %v221, 2147483648
  %v254 = vxor.u32 %v222, 2147483648
  %v255 = vxor.u32 %v223, 2147483648
  %v256 = vxor.u32 %v224, 2147483648
  %v257 = vxor.u32 %v225, 2147483648
  %v258 = vxor.u32 %v226, 2147483648
  %v259 = vxor.u32 %v227, 2147483648
  %v260 = vxor.u32 %v228, 2147483648
  %v261 = vxor.u32 %v229, 2147483648
  %v262 = vxor.u32 %v230, 2147483648
  %v263 = vxor.u32 %v231, 2147483648
  %v264 = vxor.u32 %v232, 2147483648
  %v265 = vxor.u32 %v233, 2147483648
  %v266 = vxor.u32 %v234, 2147483648
  %v267 = vxor.u32 %v235, 2147483648
  %v268 = vxor.u32 %v236, 2147483648
  %v269 = vxor.u32 %v237, 2147483648
  %v270 = vxor.u32 %v238, 2147483648
  %v271 = vxor.u32 %v239, 2147483648
  %v272 = vxor.u32 %v240, 2147483648
  %v273 = vxor.u32 %v241, 2147483648
  %v274 = vxor.u32 %v242, 2147483648
  %v275 = vxor.u32 %v243, 2147483648
  %v276 = vxor.u32 %v244, 2147483648
  %v277 = vxor.u32 %v245, 2147483648
  %v278 = vxor.u32 %v246, 2147483648
  %v279 = vxor.u32 %v247, 2147483648
  %v280 = vxor.u32 %v248, 2147483648
  %v281 = vxor.u32 %v249, 2147483648
  %v282 = vxor.u32 %v250, 2147483648
  %v283 = vxor.u32 %v251, 2147483648
  %v284 = vxor.u32 %v252, 2147483648
  %v285 = vmul.f32 %v253, 1.442695
  %v286 = vpow.pop %v285
  %v287 = vmul.f32 %v254, 1.442695
  %v288 = vpow.pop %v287
  %v289 = vmul.f32 %v255, 1.442695
  %v290 = vpow.pop %v289
  %v291 = vmul.f32 %v256, 1.442695
  %v292 = vpow.pop %v291
  %v293 = vmul.f32 %v257, 1.442695
  %v294 = vpow.pop %v293
  %v295 = vmul.f32 %v258, 1.442695
  %v296 = vpow.pop %v295
  %v297 = vmul.f32 %v259, 1.442695
  %v298 = vpow.pop %v297
  %v299 = vmul.f32 %v260, 1.442695
  %v300 = vpow.pop %v299
  %v301 = vmul.f32 %v261, 1.442695
  %v302 = vpow.pop %v301
  %v303 = vmul.f32 %v262, 1.442695
  %v304 = vpow.pop %v303
  %v305 = vmul.f32 %v263, 1.442695
  %v306 = vpow.pop %v305
  %v307 = vmul.f32 %v264, 1.442695
  %v308 = vpow.pop %v307
  %v309 = vmul.f32 %v265, 1.442695
  %v310 = vpow.pop %v309
  %v311 = vmul.f32 %v266, 1.442695
  %v312 = vpow.pop %v311
  %v313 = vmul.f32 %v267, 1.442695
  %v314 = vpow.pop %v313
  %v315 = vmul.f32 %v268, 1.442695
  %v316 = vpow.pop %v315
  %v317 = vmul.f32 %v269, 1.442695
  %v318 = vpow.pop %v317
  %v319 = vmul.f32 %v270, 1.442695
  %v320 = vpow.pop %v319
  %v321 = vmul.f32 %v271, 1.442695
  %v322 = vpow.pop %v321
  %v323 = vmul.f32 %v272, 1.442695
  %v324 = vpow.pop %v323
  %v325 = vmul.f32 %v273, 1.442695
  %v326 = vpow.pop %v325
  %v327 = vmul.f32 %v274, 1.442695
  %v328 = vpow.pop %v327
  %v329 = vmul.f32 %v275, 1.442695
  %v330 = vpow.pop %v329
  %v331 = vmul.f32 %v276, 1.442695
  %v332 = vpow.pop %v331
  %v333 = vmul.f32 %v277, 1.442695
  %v334 = vpow.pop %v333
  %v335 = vmul.f32 %v278, 1.442695
  %v336 = vpow.pop %v335
  %v337 = vmul.f32 %v279, 1.442695
  %v338 = vpow.pop %v337
  %v339 = vmul.f32 %v280, 1.442695
  %v340 = vpow.pop %v339
  %v341 = vmul.f32 %v281, 1.442695
  %v342 = vpow.pop %v341
  %v343 = vmul.f32 %v282, 1.442695
  %v344 = vpow.pop %v343
  %v345 = vmul.f32 %v283, 1.442695
  %v346 = vpow.pop %v345
  %v347 = vmul.f32 %v284, 1.442695
  %v348 = vpow.pop %v347
  %v349 = vadd.f32 %v286, 1.0
  %v350 = vadd.f32 %v288, 1.0
  %v351 = vadd.f32 %v290, 1.0
  %v352 = vadd.f32 %v292, 1.0
  %v353 = vadd.f32 %v294, 1.0
  %v354 = vadd.f32 %v296, 1.0
  %v355 = vadd.f32 %v298, 1.0
  %v356 = vadd.f32 %v300, 1.0
  %v357 = vadd.f32 %v302, 1.0
  %v358 = vadd.f32 %v304, 1.0
  %v359 = vadd.f32 %v306, 1.0
  %v360 = vadd.f32 %v308, 1.0
  %v361 = vadd.f32 %v310, 1.0
  %v362 = vadd.f32 %v312, 1.0
  %v363 = vadd.f32 %v314, 1.0
  %v364 = vadd.f32 %v316, 1.0
  %v365 = vadd.f32 %v318, 1.0
  %v366 = vadd.f32 %v320, 1.0
  %v367 = vadd.f32 %v322, 1.0
  %v368 = vadd.f32 %v324, 1.0
  %v369 = vadd.f32 %v326, 1.0
  %v370 = vadd.f32 %v328, 1.0
  %v371 = vadd.f32 %v330, 1.0
  %v372 = vadd.f32 %v332, 1.0
  %v373 = vadd.f32 %v334, 1.0
  %v374 = vadd.f32 %v336, 1.0
  %v375 = vadd.f32 %v338, 1.0
  %v376 = vadd.f32 %v340, 1.0
  %v377 = vadd.f32 %v342, 1.0
  %v378 = vadd.f32 %v344, 1.0
  %v379 = vadd.f32 %v346, 1.0
  %v380 = vadd.f32 %v348, 1.0
  %v381 = vrcp.pop %v349
  %v382 = vmul.f32 1.0, %v381
  %v383 = vrcp.pop %v350
  %v384 = vmul.f32 1.0, %v383
  %v385 = vrcp.pop %v351
  %v386 = vmul.f32 1.0, %v385
  %v387 = vrcp.pop %v352
  %v388 = vmul.f32 1.0, %v387
  %v389 = vrcp.pop %v353
  %v390 = vmul.f32 1.0, %v389
  %v391 = vrcp.pop %v354
  %v392 = vmul.f32 1.0, %v391
  %v393 = vrcp.pop %v355
  %v394 = vmul.f32 1.0, %v393
  %v395 = vrcp.pop %v356
  %v396 = vmul.f32 1.0, %v395
  %v397 = vrcp.pop %v357
  %v398 = vmul.f32 1.0, %v397
  %v399 = vrcp.pop %v358
  %v400 = vmul.f32 1.0, %v399
  %v401 = vrcp.pop %v359
  %v402 = vmul.f32 1.0, %v401
  %v403 = vrcp.pop %v360
  %v404 = vmul.f32 1.0, %v403
  %v405 = vrcp.pop %v361
  %v406 = vmul.f32 1.0, %v405
  %v407 = vrcp.pop %v362
  %v408 = vmul.f32 1.0, %v407
  %v409 = vrcp.pop %v363
  %v410 = vmul.f32 1.0, %v409
  %v411 = vrcp.pop %v364
  %v412 = vmul.f32 1.0, %v411
  %v413 = vrcp.pop %v365
  %v414 = vmul.f32 1.0, %v413
  %v415 = vrcp.pop %v366
  %v416 = vmul.f32 1.0, %v415
  %v417 = vrcp.pop %v367
  %v418 = vmul.f32 1.0, %v417
  %v419 = vrcp.pop %v368
  %v420 = vmul.f32 1.0, %v419
  %v421 = vrcp.pop %v369
  %v422 = vmul.f32 1.0, %v421
  %v423 = vrcp.pop %v370
  %v424 = vmul.f32 1.0, %v423
  %v425 = vrcp.pop %v371
  %v426 = vmul.f32 1.0, %v425
  %v427 = vrcp.pop %v372
  %v428 = vmul.f32 1.0, %v427
  %v429 = vrcp.pop %v373
  %v430 = vmul.f32 1.0, %v429
  %v431 = vrcp.pop %v374
  %v432 = vmul.f32 1.0, %v431
  %v433 = vrcp.pop %v375
  %v434 = vmul.f32 1.0, %v433
  %v435 = vrcp.pop %v376
  %v436 = vmul.f32 1.0, %v435
  %v437 = vrcp.pop %v377
  %v438 = vmul.f32 1.0, %v437
  %v439 = vrcp.pop %v378
  %v440 = vmul.f32 1.0, %v439
  %v441 = vrcp.pop %v379
  %v442 = vmul.f32 1.0, %v441
  %v443 = vrcp.pop %v380
  %v444 = vmul.f32 1.0, %v443
  %v445 = vld [vmem:[%s3] sm:$0xff]
  %v446 = vld [vmem:[%s3 + $0x8] sm:$0xff]
  %v447 = vld [vmem:[%s3 + $0x10] sm:$0xff]
  %v448 = vld [vmem:[%s3 + $0x18] sm:$0xff]
  %v449 = vld [vmem:[%s3 + $0x20] sm:$0xff]
  %v450 = vld [vmem:[%s3 + $0x28] sm:$0xff]
  %v451 = vld [vmem:[%s3 + $0x30] sm:$0xff]
  %v452 = vld [vmem:[%s3 + $0x38] sm:$0xff]
  %v453 = vld [vmem:[%s3 + $0x40] sm:$0xff]
  %v454 = vld [vmem:[%s3 + $0x48] sm:$0xff]
  %v455 = vld [vmem:[%s3 + $0x50] sm:$0xff]
  %v456 = vld [vmem:[%s3 + $0x58] sm:$0xff]
  %v457 = vld [vmem:[%s3 + $0x60] sm:$0xff]
  %v458 = vld [vmem:[%s3 + $0x68] sm:$0xff]
  %v459 = vld [vmem:[%s3 + $0x70] sm:$0xff]
  %v460 = vld [vmem:[%s3 + $0x78] sm:$0xff]
  %v461 = vld [vmem:[%s3 + $0x80] sm:$0xff]
  %v462 = vld [vmem:[%s3 + $0x88] sm:$0xff]
  %v463 = vld [vmem:[%s3 + $0x90] sm:$0xff]
  %v464 = vld [vmem:[%s3 + $0x98] sm:$0xff]
  %v465 = vld [vmem:[%s3 + $0xa0] sm:$0xff]
  %v466 = vld [vmem:[%s3 + $0xa8] sm:$0xff]
  %v467 = vld [vmem:[%s3 + $0xb0] sm:$0xff]
  %v468 = vld [vmem:[%s3 + $0xb8] sm:$0xff]
  %v469 = vld [vmem:[%s3 + $0xc0] sm:$0xff]
  %v470 = vld [vmem:[%s3 + $0xc8] sm:$0xff]
  %v471 = vld [vmem:[%s3 + $0xd0] sm:$0xff]
  %v472 = vld [vmem:[%s3 + $0xd8] sm:$0xff]
  %v473 = vld [vmem:[%s3 + $0xe0] sm:$0xff]
  %v474 = vld [vmem:[%s3 + $0xe8] sm:$0xff]
  %v475 = vld [vmem:[%s3 + $0xf0] sm:$0xff]
  %v476 = vld [vmem:[%s3 + $0xf8] sm:$0xff]
  %478 = vset.pattern.permute.xlu0 0
  %479 = vperm.xlu0 %478, %v382
  %v480 = vpop.permute.xlu0 %479
  %483 = vset.pattern.permute.xlu0 0
  %484 = vperm.xlu0 %483, %v384
  %v485 = vpop.permute.xlu0 %484
  %488 = vset.pattern.permute.xlu0 0
  %489 = vperm.xlu0 %488, %v386
  %v490 = vpop.permute.xlu0 %489
  %493 = vset.pattern.permute.xlu0 0
  %494 = vperm.xlu0 %493, %v388
  %v495 = vpop.permute.xlu0 %494
  %498 = vset.pattern.permute.xlu0 0
  %499 = vperm.xlu0 %498, %v390
  %v500 = vpop.permute.xlu0 %499
  %503 = vset.pattern.permute.xlu0 0
  %504 = vperm.xlu0 %503, %v392
  %v505 = vpop.permute.xlu0 %504
  %508 = vset.pattern.permute.xlu0 0
  %509 = vperm.xlu0 %508, %v394
  %v510 = vpop.permute.xlu0 %509
  %513 = vset.pattern.permute.xlu0 0
  %514 = vperm.xlu0 %513, %v396
  %v515 = vpop.permute.xlu0 %514
  %518 = vset.pattern.permute.xlu0 0
  %519 = vperm.xlu0 %518, %v398
  %v520 = vpop.permute.xlu0 %519
  %523 = vset.pattern.permute.xlu0 0
  %524 = vperm.xlu0 %523, %v400
  %v525 = vpop.permute.xlu0 %524
  %528 = vset.pattern.permute.xlu0 0
  %529 = vperm.xlu0 %528, %v402
  %v530 = vpop.permute.xlu0 %529
  %533 = vset.pattern.permute.xlu0 0
  %534 = vperm.xlu0 %533, %v404
  %v535 = vpop.permute.xlu0 %534
  %538 = vset.pattern.permute.xlu0 0
  %539 = vperm.xlu0 %538, %v406
  %v540 = vpop.permute.xlu0 %539
  %543 = vset.pattern.permute.xlu0 0
  %544 = vperm.xlu0 %543, %v408
  %v545 = vpop.permute.xlu0 %544
  %548 = vset.pattern.permute.xlu0 0
  %549 = vperm.xlu0 %548, %v410
  %v550 = vpop.permute.xlu0 %549
  %553 = vset.pattern.permute.xlu0 0
  %554 = vperm.xlu0 %553, %v412
  %v555 = vpop.permute.xlu0 %554
  %558 = vset.pattern.permute.xlu0 0
  %559 = vperm.xlu0 %558, %v414
  %v560 = vpop.permute.xlu0 %559
  %563 = vset.pattern.permute.xlu0 0
  %564 = vperm.xlu0 %563, %v416
  %v565 = vpop.permute.xlu0 %564
  %568 = vset.pattern.permute.xlu0 0
  %569 = vperm.xlu0 %568, %v418
  %v570 = vpop.permute.xlu0 %569
  %573 = vset.pattern.permute.xlu0 0
  %574 = vperm.xlu0 %573, %v420
  %v575 = vpop.permute.xlu0 %574
  %578 = vset.pattern.permute.xlu0 0
  %579 = vperm.xlu0 %578, %v422
  %v580 = vpop.permute.xlu0 %579
  %583 = vset.pattern.permute.xlu0 0
  %584 = vperm.xlu0 %583, %v424
  %v585 = vpop.permute.xlu0 %584
  %588 = vset.pattern.permute.xlu0 0
  %589 = vperm.xlu0 %588, %v426
  %v590 = vpop.permute.xlu0 %589
  %593 = vset.pattern.permute.xlu0 0
  %594 = vperm.xlu0 %593, %v428
  %v595 = vpop.permute.xlu0 %594
  %598 = vset.pattern.permute.xlu0 0
  %599 = vperm.xlu0 %598, %v430
  %v600 = vpop.permute.xlu0 %599
  %603 = vset.pattern.permute.xlu0 0
  %604 = vperm.xlu0 %603, %v432
  %v605 = vpop.permute.xlu0 %604
  %608 = vset.pattern.permute.xlu0 0
  %609 = vperm.xlu0 %608, %v434
  %v610 = vpop.permute.xlu0 %609
  %613 = vset.pattern.permute.xlu0 0
  %614 = vperm.xlu0 %613, %v436
  %v615 = vpop.permute.xlu0 %614
  %618 = vset.pattern.permute.xlu0 0
  %619 = vperm.xlu0 %618, %v438
  %v620 = vpop.permute.xlu0 %619
  %623 = vset.pattern.permute.xlu0 0
  %624 = vperm.xlu0 %623, %v440
  %v625 = vpop.permute.xlu0 %624
  %628 = vset.pattern.permute.xlu0 0
  %629 = vperm.xlu0 %628, %v442
  %v630 = vpop.permute.xlu0 %629
  %633 = vset.pattern.permute.xlu0 0
  %634 = vperm.xlu0 %633, %v444
  %v635 = vpop.permute.xlu0 %634
  %v637 = vmul.f32 %v445, %v480
  %v638 = vmul.f32 %v446, %v485
  %v639 = vmul.f32 %v447, %v490
  %v640 = vmul.f32 %v448, %v495
  %v641 = vmul.f32 %v449, %v500
  %v642 = vmul.f32 %v450, %v505
  %v643 = vmul.f32 %v451, %v510
  %v644 = vmul.f32 %v452, %v515
  %v645 = vmul.f32 %v453, %v520
  %v646 = vmul.f32 %v454, %v525
  %v647 = vmul.f32 %v455, %v530
  %v648 = vmul.f32 %v456, %v535
  %v649 = vmul.f32 %v457, %v540
  %v650 = vmul.f32 %v458, %v545
  %v651 = vmul.f32 %v459, %v550
  %v652 = vmul.f32 %v460, %v555
  %v653 = vmul.f32 %v461, %v560
  %v654 = vmul.f32 %v462, %v565
  %v655 = vmul.f32 %v463, %v570
  %v656 = vmul.f32 %v464, %v575
  %v657 = vmul.f32 %v465, %v580
  %v658 = vmul.f32 %v466, %v585
  %v659 = vmul.f32 %v467, %v590
  %v660 = vmul.f32 %v468, %v595
  %v661 = vmul.f32 %v469, %v600
  %v662 = vmul.f32 %v470, %v605
  %v663 = vmul.f32 %v471, %v610
  %v664 = vmul.f32 %v472, %v615
  %v665 = vmul.f32 %v473, %v620
  %v666 = vmul.f32 %v474, %v625
  %v667 = vmul.f32 %v475, %v630
  %v668 = vmul.f32 %v476, %v635
  %v669 = vld [vmem:[%s4] sm:$0xff]
  %v670 = vld [vmem:[%s4 + $0x8] sm:$0xff]
  %v671 = vld [vmem:[%s4 + $0x10] sm:$0xff]
  %v672 = vld [vmem:[%s4 + $0x18] sm:$0xff]
  %v673 = vld [vmem:[%s4 + $0x20] sm:$0xff]
  %v674 = vld [vmem:[%s4 + $0x28] sm:$0xff]
  %v675 = vld [vmem:[%s4 + $0x30] sm:$0xff]
  %v676 = vld [vmem:[%s4 + $0x38] sm:$0xff]
  %v677 = vld [vmem:[%s4 + $0x40] sm:$0xff]
  %v678 = vld [vmem:[%s4 + $0x48] sm:$0xff]
  %v679 = vld [vmem:[%s4 + $0x50] sm:$0xff]
  %v680 = vld [vmem:[%s4 + $0x58] sm:$0xff]
  %v681 = vld [vmem:[%s4 + $0x60] sm:$0xff]
  %v682 = vld [vmem:[%s4 + $0x68] sm:$0xff]
  %v683 = vld [vmem:[%s4 + $0x70] sm:$0xff]
  %v684 = vld [vmem:[%s4 + $0x78] sm:$0xff]
  %v685 = vpack.c.bf16 %v638, %v637
  %v686 = vpack.c.bf16 %v640, %v639
  %v687 = vpack.c.bf16 %v642, %v641
  %v688 = vpack.c.bf16 %v644, %v643
  %v689 = vpack.c.bf16 %v646, %v645
  %v690 = vpack.c.bf16 %v648, %v647
  %v691 = vpack.c.bf16 %v650, %v649
  %v692 = vpack.c.bf16 %v652, %v651
  %v693 = vpack.c.bf16 %v654, %v653
  %v694 = vpack.c.bf16 %v656, %v655
  %v695 = vpack.c.bf16 %v658, %v657
  %v696 = vpack.c.bf16 %v660, %v659
  %v697 = vpack.c.bf16 %v662, %v661
  %v698 = vpack.c.bf16 %v664, %v663
  %v699 = vpack.c.bf16 %v666, %v665
  %v700 = vpack.c.bf16 %v668, %v667
  %v717 = vunpack.c.l.b16 %v669
  %v718 = vunpack.c.h.b16 %v669
  %v719 = vunpack.c.l.b16 %v670
  %v720 = vunpack.c.h.b16 %v670
  %v721 = vunpack.c.l.b16 %v671
  %v722 = vunpack.c.h.b16 %v671
  %v723 = vunpack.c.l.b16 %v672
  %v724 = vunpack.c.h.b16 %v672
  %v725 = vunpack.c.l.b16 %v673
  %v726 = vunpack.c.h.b16 %v673
  %v727 = vunpack.c.l.b16 %v674
  %v728 = vunpack.c.h.b16 %v674
  %v729 = vunpack.c.l.b16 %v675
  %v730 = vunpack.c.h.b16 %v675
  %v731 = vunpack.c.l.b16 %v676
  %v732 = vunpack.c.h.b16 %v676
  %v733 = vunpack.c.l.b16 %v677
  %v734 = vunpack.c.h.b16 %v677
  %v735 = vunpack.c.l.b16 %v678
  %v736 = vunpack.c.h.b16 %v678
  %v737 = vunpack.c.l.b16 %v679
  %v738 = vunpack.c.h.b16 %v679
  %v739 = vunpack.c.l.b16 %v680
  %v740 = vunpack.c.h.b16 %v680
  %v741 = vunpack.c.l.b16 %v681
  %v742 = vunpack.c.h.b16 %v681
  %v743 = vunpack.c.l.b16 %v682
  %v744 = vunpack.c.h.b16 %v682
  %v745 = vunpack.c.l.b16 %v683
  %v746 = vunpack.c.h.b16 %v683
  %v747 = vunpack.c.l.b16 %v684
  %v748 = vunpack.c.h.b16 %v684
  %v749 = vpack.c.b16 %v719, %v717
  %v750 = vpack.c.b16 %v720, %v718
  %v751 = vpack.c.b16 %v723, %v721
  %v752 = vpack.c.b16 %v724, %v722
  %v753 = vpack.c.b16 %v727, %v725
  %v754 = vpack.c.b16 %v728, %v726
  %v755 = vpack.c.b16 %v731, %v729
  %v756 = vpack.c.b16 %v732, %v730
  %v757 = vpack.c.b16 %v735, %v733
  %v758 = vpack.c.b16 %v736, %v734
  %v759 = vpack.c.b16 %v739, %v737
  %v760 = vpack.c.b16 %v740, %v738
  %v761 = vpack.c.b16 %v743, %v741
  %v762 = vpack.c.b16 %v744, %v742
  %v763 = vpack.c.b16 %v747, %v745
  %v764 = vpack.c.b16 %v748, %v746
  %781 = vmatprep.subr.bf16.mxu0 0
  %782 = vmatpush1.bf16.msra.mxu0 %v685
  %783 = vmatprep.subr.bf16.mxu0 0
  %784 = vmatpush1.bf16.msra.mxu0 %v686
  %785 = vmatprep.subr.bf16.mxu0 0
  %786 = vmatpush1.bf16.msra.mxu0 %v687
  %787 = vmatprep.subr.bf16.mxu0 0
  %788 = vmatpush1.bf16.msra.mxu0 %v688
  %789 = vmatprep.subr.bf16.mxu0 0
  %790 = vmatpush1.bf16.msra.mxu0 %v689
  %791 = vmatprep.subr.bf16.mxu0 0
  %792 = vmatpush1.bf16.msra.mxu0 %v690
  %793 = vmatprep.subr.bf16.mxu0 0
  %794 = vmatpush1.bf16.msra.mxu0 %v691
  %795 = vmatprep.subr.bf16.mxu0 0
  %796 = vmatpush1.bf16.msra.mxu0 %v692
  %797 = vmatprep.subr.bf16.mxu0 0
  %798 = vmatpush1.bf16.msra.mxu0 %v693
  %799 = vmatprep.subr.bf16.mxu0 0
  %800 = vmatpush1.bf16.msra.mxu0 %v694
  %801 = vmatprep.subr.bf16.mxu0 0
  %802 = vmatpush1.bf16.msra.mxu0 %v695
  %803 = vmatprep.subr.bf16.mxu0 0
  %804 = vmatpush1.bf16.msra.mxu0 %v696
  %805 = vmatprep.subr.bf16.mxu0 0
  %806 = vmatpush1.bf16.msra.mxu0 %v697
  %807 = vmatprep.subr.bf16.mxu0 0
  %808 = vmatpush1.bf16.msra.mxu0 %v698
  %809 = vmatprep.subr.bf16.mxu0 0
  %810 = vmatpush1.bf16.msra.mxu0 %v699
  %811 = vmatprep.subr.bf16.mxu0 0
  %812 = vmatpush1.bf16.msra.mxu0 %v700
  %813 = vmatprep.mubr.bf16.mxu0 %v750
  %814 = vmatmul.mubr.bf16.gmra.mrb[0].mxu0 %v749
  %v815 = vpop.f32.mrb[0].mxu0
  %v816 = vadd.f32 0.0, %v815
  %v817 = vpop.f32.mrb[0].mxu0
  %v818 = vpop.f32.mrb[0].mxu0
  %v819 = vadd.f32 0.0, %v818
  %v820 = vpop.f32.mrb[0].mxu0
  %821 = vmatprep.mubr.bf16.mxu0 %v752
  %822 = vmatmul.mubr.bf16.gmra.mrb[0].mxu0 %v751
  %v823 = vpop.f32.mrb[0].mxu0
  %v824 = vadd.f32 0.0, %v823
  %v825 = vpop.f32.mrb[0].mxu0
  %v826 = vpop.f32.mrb[0].mxu0
  %v827 = vadd.f32 0.0, %v826
  %v828 = vpop.f32.mrb[0].mxu0
  %829 = vmatprep.mubr.bf16.mxu0 %v754
  %830 = vmatmul.mubr.bf16.gmra.mrb[0].mxu0 %v753
  %v831 = vpop.f32.mrb[0].mxu0
  %v832 = vadd.f32 0.0, %v831
  %v833 = vpop.f32.mrb[0].mxu0
  %v834 = vpop.f32.mrb[0].mxu0
  %v835 = vadd.f32 0.0, %v834
  %v836 = vpop.f32.mrb[0].mxu0
  %837 = vmatprep.mubr.bf16.mxu0 %v756
  %838 = vmatmul.mubr.bf16.gmra.mrb[0].mxu0 %v755
  %v839 = vpop.f32.mrb[0].mxu0
  %v840 = vadd.f32 0.0, %v839
  %v841 = vpop.f32.mrb[0].mxu0
  %v842 = vpop.f32.mrb[0].mxu0
  %v843 = vadd.f32 0.0, %v842
  %v844 = vpop.f32.mrb[0].mxu0
  %845 = vmatprep.mubr.bf16.mxu0 %v758
  %846 = vmatmul.mubr.bf16.gmra.mrb[0].mxu0 %v757
  %v847 = vpop.f32.mrb[0].mxu0
  %v848 = vadd.f32 0.0, %v847
  %v849 = vpop.f32.mrb[0].mxu0
  %v850 = vpop.f32.mrb[0].mxu0
  %v851 = vadd.f32 0.0, %v850
  %v852 = vpop.f32.mrb[0].mxu0
  %853 = vmatprep.mubr.bf16.mxu0 %v760
  %854 = vmatmul.mubr.bf16.gmra.mrb[0].mxu0 %v759
  %v855 = vpop.f32.mrb[0].mxu0
  %v856 = vadd.f32 0.0, %v855
  %v857 = vpop.f32.mrb[0].mxu0
  %v858 = vpop.f32.mrb[0].mxu0
  %v859 = vadd.f32 0.0, %v858
  %v860 = vpop.f32.mrb[0].mxu0
  %861 = vmatprep.mubr.bf16.mxu0 %v762
  %862 = vmatmul.mubr.bf16.gmra.mrb[0].mxu0 %v761
  %v863 = vpop.f32.mrb[0].mxu0
  %v864 = vadd.f32 0.0, %v863
  %v865 = vpop.f32.mrb[0].mxu0
  %v866 = vpop.f32.mrb[0].mxu0
  %v867 = vadd.f32 0.0, %v866
  %v868 = vpop.f32.mrb[0].mxu0
  %869 = vmatprep.mubr.bf16.mxu0 %v764
  %870 = vmatmul.mubr.bf16.gmra.mrb[0].mxu0 %v763
  %v871 = vpop.f32.mrb[0].mxu0
  %v872 = vadd.f32 0.0, %v871
  %v873 = vpop.f32.mrb[0].mxu0
  %v874 = vpop.f32.mrb[0].mxu0
  %v875 = vadd.f32 0.0, %v874
  %v876 = vpop.f32.mrb[0].mxu0
  %877 = vdwg.mxu0
  %878 = vst [vmem:[%s5] sm:$0xff] %v816
  %879 = vst [vmem:[%s5 + $0x8] sm:$0xff] %v819
  %880 = vst [vmem:[%s5 + $0x10] sm:$0xff] %v824
  %881 = vst [vmem:[%s5 + $0x18] sm:$0xff] %v827
  %882 = vst [vmem:[%s5 + $0x20] sm:$0xff] %v832
  %883 = vst [vmem:[%s5 + $0x28] sm:$0xff] %v835
  %884 = vst [vmem:[%s5 + $0x30] sm:$0xff] %v840
  %885 = vst [vmem:[%s5 + $0x38] sm:$0xff] %v843
  %886 = vst [vmem:[%s5 + $0x40] sm:$0xff] %v848
  %887 = vst [vmem:[%s5 + $0x48] sm:$0xff] %v851
  %888 = vst [vmem:[%s5 + $0x50] sm:$0xff] %v856
  %889 = vst [vmem:[%s5 + $0x58] sm:$0xff] %v859
  %890 = vst [vmem:[%s5 + $0x60] sm:$0xff] %v864
  %891 = vst [vmem:[%s5 + $0x68] sm:$0xff] %v867
  %892 = vst [vmem:[%s5 + $0x70] sm:$0xff] %v872
  %893 = vst [vmem:[%s5 + $0x78] sm:$0xff] %v875
  // Predicated region
  $region22: #{module_forward.1} parent=0 // pred_check
    _
  $region23: #{module_forward.1} parent=0 // pred_check_branch
    %895 = sbr.rel (0) target = $region25
  $region24: #{module_forward.1} parent=0 // pred_region
    _
  $region25: #{module_forward.1} parent=0 // pred_fallthru
    _
  // Predicated region
  $region26: #{module_forward.1} parent=0 // pred_check
    _
  $region27: #{module_forward.1} parent=0 // pred_check_branch
    %897 = sbr.rel (0) target = $region29
  $region28: #{module_forward.1} parent=0 // pred_region
    _
  $region29: #{module_forward.1} parent=0 // pred_fallthru
    _

</llo_original>
